<compile_context>
chip_gen: v7x
topology: tpu7x:2x2x1
jax: 0.10.0
libtpu: 0.0.40
codegen_flags: <defaults>
</compile_context>

<pallas_src>
import functools

import jax
import jax.numpy as jnp
from jax.experimental import pallas as pl
from jax.experimental.pallas import tpu as pltpu


def _dropout_kernel(x_ref, bits_ref, o_ref, *, threshold, scale):
    # Integer-threshold Bernoulli mask: bits are uniform 32-bit values; dropping the
    # sign bit gives a uniform int in [0, 2^31), and P(rbits >= threshold) = 1 - p.
    rbits = bits_ref[...] & jnp.int32(0x7FFFFFFF)
    keep = rbits >= jnp.int32(threshold)
    o_ref[...] = jnp.where(keep, x_ref[...] * jnp.float32(scale), jnp.float32(0.0))


def _lane_dense_2d(total):
    """(rows, width, pad) with width a multiple of 128 (padding the tail if needed)."""
    for w in (2048, 1024, 512, 256, 128):
        if total % w == 0:
            return total // w, w, 0
    w = 128
    padded = ((total + w - 1) // w) * w
    return padded // w, w, padded - total


def _pick_row_tile(rows, width, elem_bytes=4, max_tile_bytes=6 * 1024 * 1024):
    """Largest row tile (multiple of 8, or full extent) within the VMEM budget,
    capped so large inputs get >= 4 grid steps (pipelining + megacore sharding)."""
    max_rows = max(8, (max_tile_bytes // (width * elem_bytes)) // 8 * 8)
    if rows >= 32:
        max_rows = min(max_rows, max(8, (rows // 4) // 8 * 8))
    if rows <= max_rows:
        return rows                      # full second-to-last dim -> (8,128) escape hatch
    return max_rows                      # Pallas masks the partial trailing block


def complex_dropout1d(x, p=0.5, *, training=True, seed=0):
    """Forward pass of ComplexDropout1d. x: complex64, shape (N, C, L)."""
    if not training or p == 0.0:
        return x                         # F.dropout identity path
    assert jnp.iscomplexobj(x) and x.dtype == jnp.complex64, "expects complex64 input"
    if p >= 1.0:
        return jnp.zeros_like(x)

    p = float(p)
    shape = x.shape
    # Interleaved (re, im) trailing-dim-2 f32 view. The mask is i.i.d. per element,
    # so elementwise dropout on this view == independent dropout on each plane.
    planes = jnp.stack([jnp.real(x), jnp.imag(x)], axis=-1)      # (..., 2) float32
    total = planes.size

    rows, width, pad = _lane_dense_2d(total)
    flat = planes.reshape(-1)
    if pad:
        flat = jnp.concatenate([flat, jnp.zeros((pad,), jnp.float32)])
    flat = flat.reshape(rows, width)

    # Random bits drawn once in the wrapper (portable across Mosaic/interpret).
    key = jax.random.PRNGKey(int(seed))
    bits = jax.lax.bitcast_convert_type(
        jax.random.bits(key, (rows, width), dtype=jnp.uint32), jnp.int32)

    threshold = int(round(p * float(1 << 31)))
    threshold = max(0, min(threshold, (1 << 31) - 1))            # clamp for p ~ 1
    scale = 1.0 / (1.0 - p)

    R = _pick_row_tile(rows, width)
    grid = (pl.cdiv(rows, R),)

    kernel = functools.partial(_dropout_kernel, threshold=threshold, scale=scale)

    out_flat = pl.pallas_call(
        kernel,
        out_shape=jax.ShapeDtypeStruct((rows, width), jnp.float32),
        grid=grid,
        in_specs=[pl.BlockSpec((R, width), lambda i: (i, 0)),
                  pl.BlockSpec((R, width), lambda i: (i, 0))],
        out_specs=pl.BlockSpec((R, width), lambda i: (i, 0)),
        input_output_aliases={0: 0},     # donate the temporary slab to the output
        compiler_params=pltpu.CompilerParams(
            dimension_semantics=("parallel",),
            vmem_limit_bytes=48 * 1024 * 1024,
        ),
        cost_estimate=pl.CostEstimate(
            flops=3 * rows * width,
            transcendentals=0,
            bytes_accessed=3 * rows * width * 4,
        ),
    )(flat, bits)

    out = out_flat.reshape(-1)
    if pad:
        out = out[:total]
    out = out.reshape(*shape, 2)
    return jax.lax.complex(out[..., 0], out[..., 1])


if __name__ == "__main__":
    key = jax.random.PRNGKey(0)
    k_re, k_im = jax.random.split(key)
    N, C, L = 2, 4, 16
    x = (jax.random.normal(k_re, (N, C, L), dtype=jnp.float32)
         + 1j * jax.random.normal(k_im, (N, C, L), dtype=jnp.float32)).astype(jnp.complex64)

    p = 0.5
    out = jax.block_until_ready(complex_dropout1d(x, p=p, training=True, seed=1234))

    assert out.shape == (N, C, L) and out.dtype == jnp.complex64

    # Every output element must be either 0 (dropped) or input * 1/(1-p) (kept),
    # independently for the real and imaginary planes.
    scale = 1.0 / (1.0 - p)
    for plane, src in ((jnp.real(out), jnp.real(x)), (jnp.imag(out), jnp.imag(x))):
        scaled = src * scale
        is_zero = jnp.abs(plane) <= 1e-6
        is_scaled = jnp.abs(plane - scaled) <= 1e-5 * (1.0 + jnp.abs(scaled))
        assert bool(jnp.all(is_zero | is_scaled)), "output must be 0 or x/(1-p)"

    # Keep fraction should be statistically plausible for p=0.5.
    keep_frac = float(jnp.mean((jnp.abs(jnp.real(out)) > 1e-6).astype(jnp.float32)))
    assert 0.1 < keep_frac < 0.9, f"implausible keep fraction {keep_frac}"

    # Eval mode is the identity.
    out_eval = jax.block_until_ready(complex_dropout1d(x, p=p, training=False))
    assert jnp.allclose(out_eval, x)

    print("KERNEL_OK")
</pallas_src>

<mosaic_0001>
module attributes {stable_mosaic.version = 11 : i64} {
  func.func @_dropout_kernel(%arg0: i32, %arg1: memref<1x256xf32, #tpu.memory_space<vmem>>, %arg2: memref<1x256xi32, #tpu.memory_space<vmem>>, %arg3: memref<1x256xf32, #tpu.memory_space<vmem>>) attributes {dimension_semantics = [#tpu.dimension_semantics<parallel>], iteration_bounds = array<i64: 1>, scalar_prefetch = 0 : i64, scratch_operands = 0 : i64, tpu.core_type = #tpu.core_type<tc>, window_params = [{transform_indices = @transform_0, window_bounds = array<i64: 1, 256>}, {transform_indices = @transform_1, window_bounds = array<i64: 1, 256>}, {transform_indices = @transform_2, window_bounds = array<i64: 1, 256>}]} {
    %c0 = arith.constant 0 : index
    %c0_0 = arith.constant 0 : index
    %0 = vector.load %arg2[%c0, %c0_0] : memref<1x256xi32, #tpu.memory_space<vmem>>, vector<1x256xi32>
    %c2147483647_i32 = arith.constant 2147483647 : i32
    %1 = vector.broadcast %c2147483647_i32 : i32 to vector<1x256xi32>
    %2 = arith.andi %0, %1 : vector<1x256xi32>
    %c1073741824_i32 = arith.constant 1073741824 : i32
    %3 = vector.broadcast %c1073741824_i32 : i32 to vector<1x256xi32>
    %4 = arith.cmpi sge, %2, %3 : vector<1x256xi32>
    %c0_1 = arith.constant 0 : index
    %c0_2 = arith.constant 0 : index
    %5 = vector.load %arg1[%c0_1, %c0_2] : memref<1x256xf32, #tpu.memory_space<vmem>>, vector<1x256xf32>
    %cst = arith.constant 2.000000e+00 : f32
    %6 = vector.broadcast %cst : f32 to vector<1x256xf32>
    %7 = arith.mulf %5, %6 : vector<1x256xf32>
    %cst_3 = arith.constant 0.000000e+00 : f32
    %8 = vector.broadcast %cst_3 : f32 to vector<1x256xf32>
    %9 = arith.select %4, %7, %8 : vector<1x256xi1>, vector<1x256xf32>
    %c0_4 = arith.constant 0 : index
    %c0_5 = arith.constant 0 : index
    %10 = vector.load %arg3[%c0_4, %c0_5] : memref<1x256xf32, #tpu.memory_space<vmem>>, vector<1x256xf32>
    tpu.vector_store %arg3[%c0_4, %c0_5], %9 {strides = array<i32>} : memref<1x256xf32, #tpu.memory_space<vmem>>, vector<1x256xf32>,
    return
  }
  func.func @transform_0(%arg0: i32) -> (i32, i32) {
    %c0_i32 = arith.constant 0 : i32
    %c0_i32_0 = arith.constant 0 : i32
    return %arg0, %c0_i32 : i32, i32
  }
  func.func @transform_1(%arg0: i32) -> (i32, i32) {
    %c0_i32 = arith.constant 0 : i32
    %c0_i32_0 = arith.constant 0 : i32
    return %arg0, %c0_i32 : i32, i32
  }
  func.func @transform_2(%arg0: i32) -> (i32, i32) {
    %c0_i32 = arith.constant 0 : i32
    %c0_i32_0 = arith.constant 0 : i32
    return %arg0, %c0_i32 : i32, i32
  }
}

</mosaic_0001>

<llo_original>
// kernel: tpu_custom_call.1
$region0: #{tpu_custom_call.1}
  #allocation0 [shape = 'u32[]', space=smem, size = 0x4, offset = 0x4, fixed_abs, tag = 'smem constant byte address 0x4 - core index']
  #allocation1 [shape = 'u32[144,128]{1,0:T(1,128)}', space=vmem, size = 0x12000, scoped, tag = 'internal scratch']
  %s0 = inlined_call_operand.hbm [shape: f32[1,256], index: 0, kind: input, shape index: {}, may-alias: {0,2}]
  %s1 = inlined_call_operand.vmem [shape: s32[1,256], index: 1, kind: input, shape index: {}]
  %s2 = inlined_call_operand.hbm [shape: f32[1,256], index: 2, kind: output, shape index: {}, may-alias: {0,2}]
  %s3 = sld [smem:[#allocation0]]
  $region22: #{tpu_custom_call.1} parent=0
    _
  %s5 = ssub.s32 1, %s3
  %s6 = scalar_select 0, %s5, %s3
  $region1: #{tpu_custom_call.1} parent=0
    #allocation2 [shape = 'u8[1024]{0}', space=vmem, size = 0x400, scoped, tag = 'input window, operand 0, single buffered']
    #allocation3 [shape = 's32[1]{0}', space=sflag, size = 0x4, scoped, tag = 'scoped memory for tpu_custom_call.1']
    #allocation4 [shape = 's32[1]{0}', space=sflag, size = 0x4, scoped, tag = 'scoped memory for tpu_custom_call.1']
    #allocation5 [shape = 'u8[1024]{0}', space=vmem, size = 0x400, scoped, tag = 'output window, operand 0, single buffered']
    %7 = vsyncpa [#allocation3], 0
    %8 = vsyncpa [#allocation4], 0
    // Predicated region
    $region2: #{tpu_custom_call.1} parent=1 // pred_check
      _
    $region3: #{tpu_custom_call.1} parent=1 // pred_check_branch
      %10 = sbr.rel (0) target = $region5
    $region4: #{tpu_custom_call.1} parent=1 // pred_region
      %s12 = ssub.s32 32, 32
      %13 = vsyncadd [#allocation3], %s12
      %s15 = sshll.u32 [#allocation2], 4
      %s16 = int_to_ptr.vmem [resolvable:$true] %s15
      %18 = dma.hbm_to_vmem [thread:$0]  %s0, 32, %s16, [#allocation3]
    $region5: #{tpu_custom_call.1} parent=1 // pred_fallthru
      _
    // Predicated region
    $region6: #{tpu_custom_call.1} parent=1 // pred_check
      _
    $region7: #{tpu_custom_call.1} parent=1 // pred_check_branch
      %20 = sbr.rel (0) target = $region9
    $region8: #{tpu_custom_call.1} parent=1 // pred_region
      _
    $region9: #{tpu_custom_call.1} parent=1 // pred_fallthru
      _
    // Predicated region
    $region10: #{tpu_custom_call.1} parent=1 // pred_check
      _
    $region11: #{tpu_custom_call.1} parent=1 // pred_check_branch
      %22 = sbr.rel (0) target = $region13
    $region12: #{tpu_custom_call.1} parent=1 // pred_region
      %23 = dma.done [#allocation3], 32
    $region13: #{tpu_custom_call.1} parent=1 // pred_fallthru
      _
    %v24 = vld [vmem:[%s1] sm:$0x3]
    %v25 = vand.u32 %v24, 2147483647
    %vm26 = vcmp.ge.s32.totalorder %v25, 1073741824
    %v27 = vld [vmem:[#allocation2] sm:$0x3]
    %v28 = vmul.f32 %v27, 2.0
    %v29 = vsel %vm26, %v28, 0.0
    %v30 = vlaneseq
    %vm31 = vcmp.ge.s32.totalorder %v30, 0
    %vm32 = vcmp.lt.s32.totalorder %v30, 256
    %vm33 = vmand %vm31, %vm32
    %34 = vst.msk [vmem:[#allocation5] sm:$0x3] %vm33, %v29
    // Predicated region
    $region14: #{tpu_custom_call.1} parent=1 // pred_check
      _
    $region15: #{tpu_custom_call.1} parent=1 // pred_check_branch
      %36 = sbr.rel (0) target = $region17
    $region16: #{tpu_custom_call.1} parent=1 // pred_region
      %s38 = ssub.s32 32, 32
      %39 = vsyncadd [#allocation4], %s38
      %s41 = sshll.u32 [#allocation5], 4
      %s42 = int_to_ptr.vmem [resolvable:$true] %s41
      %44 = dma.vmem_to_hbm [thread:$0]  %s42, 32, %s2, [#allocation4]
    $region17: #{tpu_custom_call.1} parent=1 // pred_fallthru
      _
    // Predicated region
    $region18: #{tpu_custom_call.1} parent=1 // pred_check
      _
    $region19: #{tpu_custom_call.1} parent=1 // pred_check_branch
      %46 = sbr.rel (0) target = $region21
    $region20: #{tpu_custom_call.1} parent=1 // pred_region
      %47 = dma.done [#allocation4], 32
    $region21: #{tpu_custom_call.1} parent=1 // pred_fallthru
      _
    %48 = vsyncpa [#allocation3], 1
    %49 = vsyncpa [#allocation4], 1

</llo_original>
